<compile_context>
chip_gen: v5e
topology: v5e:2x2
jax: 0.10.0
libtpu: 0.0.40
codegen_flags: <defaults>
</compile_context>

<pallas_src>
import functools

import jax
import jax.numpy as jnp
from jax.experimental import pallas as pl
from jax.experimental.pallas import tpu as pltpu

# ---- physical constants (scipy.constants.h / .c) ----------------------------
PLANCK_H = 6.62607015e-34
SPEED_C = 299792458.0

# ---- FM defaults -------------------------------------------------------------
PIXEL_SIZE = 1e-05
QUANTUM_EFFICIENCY = 0.5
WAVELENGTH = 5.2e-07
DARK_CURRENT = 10.0
READ_STD = 18.0
FWC = 12000.0
RESPONSE_TAIL = 0.1
GAIN = 0.07
PRNU = 0.02
NUM_BITS = 10

TARGET_LENGTH = 4          # target_length
MAX_TOTAL_TIME = 1.0       # max_total_time

I2E = PIXEL_SIZE ** 2 * QUANTUM_EFFICIENCY * WAVELENGTH / PLANCK_H / SPEED_C
THRESHOLD = (1.0 - RESPONSE_TAIL) * FWC
GAP = RESPONSE_TAIL * FWC
MAX_VALUE = float(2 ** NUM_BITS - 1)

# ---- tiling knobs ------------------------------------------------------------
# ~2 MiB f32 tiles: 4 double-buffered I/O streams (~16 MiB) + a few elementwise
# temporaries stay well under the 48 MiB limit, which itself stays under v7x's
# 64 MiB physical VMEM.  (v5e/v6e have 128 MiB and could take 4-8 MiB tiles;
# a common conservative setting is used here.)
_TARGET_BLOCK_BYTES = 2 * 1024 * 1024
_VMEM_LIMIT_BYTES = 48 * 1024 * 1024


def _fm_kernel(x_ref, eps_ref, fpn_ref, out_ref, *, idc):
    """One (n, row-block, t) tile of the FM pipeline (pure elementwise).

    x_ref   : VMEM (rblk, L) f32  integrated radiance tile
    eps_ref : VMEM (rblk, L) f32  standard-normal field (merged shot+read)
    fpn_ref : VMEM (rblk, L) f32  U(-0.5, 0.5) fixed-pattern field (per n only)
    out_ref : VMEM (rblk, L) f32  quantized output tile
    """
    # _apply_to_burst: photons -> electrons
    x = I2E * x_ref[...]

    # _inject_noise, with the idc add/subtract folded out and the independent
    # shot (Gaussian reparameterization) + read draws merged into one field:
    #   Var = (x + idc) + sigma_r^2   (sum of independent Gaussians)
    lam = jnp.maximum(x + idc, 0.0)
    noisy = x + jnp.sqrt(lam + READ_STD * READ_STD) * eps_ref[...]

    # _respond: soft saturation above threshold, gain, PRNU fixed-pattern noise
    diff = jnp.maximum((noisy - THRESHOLD) / GAP, 0.0)   # nlr unused below thr
    nlr = THRESHOLD + (1.0 - jnp.exp(-diff)) * GAP
    resp = GAIN * jnp.where(noisy < THRESHOLD, noisy, nlr)
    resp = resp * (1.0 + PRNU * fpn_ref[...])

    # _quantize: round_ste (forward = round), normalize, clamp
    out_ref[...] = jnp.clip(jnp.round(resp) / MAX_VALUE, 0.0, 1.0)


def _lane_width(P, W):
    """Lane-dense last dim: largest of {1024,512,256,128} that divides P=C*H*W."""
    for L in (1024, 512, 256, 128):
        if P % L == 0:
            return L
    return W            # fallback: keep original W (full-dim block, may mask)


def _row_block(rows, L):
    """Largest row block (multiple of 8) whose f32 tile is ~_TARGET_BLOCK_BYTES."""
    target = max(8, _TARGET_BLOCK_BYTES // (L * 4))
    if rows <= target:
        return rows     # full dim — always layout-legal
    return int(target // 8 * 8)


def fm_forward(samples, key):
    """samples: (N, T, C, H, W) f32 integrated radiance; key: jax PRNG key."""
    N, T, C, H, W = samples.shape
    P = C * H * W
    L = _lane_width(P, W)
    rows = P // L
    x = samples.reshape(N, T, rows, L)     # row-major order unchanged (free)

    # uniform + fix_total_time + min_time=0 + delay=0: time division == 1/T,
    # so the per-frame integrated dark current is a single constant.
    idc = MAX_TOTAL_TIME * DARK_CURRENT / T

    # Noise fields (fresh per forward call, like the module):
    #   eps ~ N(0,1) per (n, t, pixel)      -> merged shot + read noise
    #   fpn ~ U(-0.5,0.5) per (n, pixel)    -> PRNU fixed pattern, shared over T
    k_eps, k_fpn = jax.random.split(key)
    eps = jax.random.normal(k_eps, (N, T, rows, L), jnp.float32)
    fpn = jax.random.uniform(k_fpn, (N, rows, L), jnp.float32,
                             minval=-0.5, maxval=0.5)

    rblk = _row_block(rows, L)
    grid = (N, pl.cdiv(rows, rblk), T)     # T innermost: FPN tile fetched once

    frame_blk = pl.BlockSpec((None, None, rblk, L),
                             lambda n, rb, t: (n, t, rb, 0))
    fpn_blk = pl.BlockSpec((None, rblk, L),
                           lambda n, rb, t: (n, rb, 0))

    out = pl.pallas_call(
        functools.partial(_fm_kernel, idc=idc),
        out_shape=jax.ShapeDtypeStruct((N, T, rows, L), jnp.float32),
        grid=grid,
        in_specs=[frame_blk, frame_blk, fpn_blk],
        out_specs=frame_blk,
        compiler_params=pltpu.CompilerParams(
            dimension_semantics=("parallel", "parallel", "arbitrary"),
            vmem_limit_bytes=_VMEM_LIMIT_BYTES,
        ),
    )(x, eps, fpn)
    return out.reshape(N, T, C, H, W)


if __name__ == "__main__":
    key = jax.random.PRNGKey(0)
    N, T, C, H, W = 2, TARGET_LENGTH, 3, 8, 128
    k_samples, k_noise = jax.random.split(key)

    # radiance scaled so both the linear and saturating response branches are hit
    samples = jax.random.uniform(k_samples, (N, T, C, H, W), jnp.float32) * 2e-4

    out = jax.block_until_ready(fm_forward(samples, k_noise))
    out2 = jax.block_until_ready(fm_forward(samples, k_noise))

    # structural checks
    assert out.shape == (N, T, C, H, W) and out.dtype == jnp.float32
    assert bool(jnp.all(out == out2))                          # deterministic per key
    assert bool(jnp.all((out >= 0.0) & (out <= 1.0)))
    codes = out * MAX_VALUE
    assert bool(jnp.allclose(codes, jnp.round(codes), atol=1e-2))   # on 10-bit grid

    # statistical check against the noise-free pure-JAX pipeline (noise keys are
    # consumed in the wrapper, so comparison is distributional, not bit-exact)
    xe = I2E * samples
    nlr = THRESHOLD + (1.0 - jnp.exp(-jnp.maximum((xe - THRESHOLD) / GAP, 0.0))) * GAP
    resp = GAIN * jnp.where(xe < THRESHOLD, xe, nlr)
    ref = jnp.clip(jnp.round(resp) / MAX_VALUE, 0.0, 1.0)
    mad = float(jnp.mean(jnp.abs(out - ref)))
    bias = float(jnp.mean(out - ref))
    assert 3e-4 < mad < 0.05          # noise was injected, and is of the right scale
    assert abs(bias) < 0.01           # noise is (nearly) zero-mean through the pipeline

    print("KERNEL_OK")
</pallas_src>

<mosaic_0001>
module attributes {stable_mosaic.version = 11 : i64} {
  func.func @_fm_kernel(%arg0: i32, %arg1: i32, %arg2: i32, %arg3: memref<1x1x3x1024xf32, #tpu.memory_space<vmem>>, %arg4: memref<1x1x3x1024xf32, #tpu.memory_space<vmem>>, %arg5: memref<1x3x1024xf32, #tpu.memory_space<vmem>>, %arg6: memref<1x1x3x1024xf32, #tpu.memory_space<vmem>>) attributes {dimension_semantics = [#tpu.dimension_semantics<parallel>, #tpu.dimension_semantics<parallel>, #tpu.dimension_semantics<arbitrary>], iteration_bounds = array<i64: 2, 1, 4>, scalar_prefetch = 0 : i64, scratch_operands = 0 : i64, tpu.core_type = #tpu.core_type<tc>, window_params = [{transform_indices = @transform_0, window_bounds = array<i64: 1, 1, 3, 1024>}, {transform_indices = @transform_1, window_bounds = array<i64: 1, 1, 3, 1024>}, {transform_indices = @transform_2, window_bounds = array<i64: 1, 3, 1024>}, {transform_indices = @transform_3, window_bounds = array<i64: 1, 1, 3, 1024>}]} {
    %c0 = arith.constant 0 : index
    %c0_0 = arith.constant 0 : index
    %c0_1 = arith.constant 0 : index
    %c0_2 = arith.constant 0 : index
    %0 = vector.load %arg3[%c0, %c0_0, %c0_1, %c0_2] : memref<1x1x3x1024xf32, #tpu.memory_space<vmem>>, vector<1x1x3x1024xf32>
    %1 = vector.shape_cast %0 : vector<1x1x3x1024xf32> to vector<3x1024xf32>
    %cst = arith.constant 0x4CF9A5AF : f32
    %2 = vector.broadcast %cst : f32 to vector<3x1024xf32>
    %3 = arith.mulf %2, %1 : vector<3x1024xf32>
    %cst_3 = arith.constant 2.500000e+00 : f32
    %4 = vector.broadcast %cst_3 : f32 to vector<3x1024xf32>
    %5 = arith.addf %3, %4 : vector<3x1024xf32>
    %cst_4 = arith.constant 0.000000e+00 : f32
    %6 = vector.broadcast %cst_4 : f32 to vector<3x1024xf32>
    %7 = arith.maximumf %5, %6 : vector<3x1024xf32>
    %cst_5 = arith.constant 3.240000e+02 : f32
    %8 = vector.broadcast %cst_5 : f32 to vector<3x1024xf32>
    %9 = arith.addf %7, %8 : vector<3x1024xf32>
    %10 = math.sqrt %9 : vector<3x1024xf32>
    %c0_6 = arith.constant 0 : index
    %c0_7 = arith.constant 0 : index
    %c0_8 = arith.constant 0 : index
    %c0_9 = arith.constant 0 : index
    %11 = vector.load %arg4[%c0_6, %c0_7, %c0_8, %c0_9] : memref<1x1x3x1024xf32, #tpu.memory_space<vmem>>, vector<1x1x3x1024xf32>
    %12 = vector.shape_cast %11 : vector<1x1x3x1024xf32> to vector<3x1024xf32>
    %13 = arith.mulf %10, %12 : vector<3x1024xf32>
    %14 = arith.addf %3, %13 : vector<3x1024xf32>
    %cst_10 = arith.constant 1.080000e+04 : f32
    %15 = vector.broadcast %cst_10 : f32 to vector<3x1024xf32>
    %16 = arith.subf %14, %15 : vector<3x1024xf32>
    %cst_11 = arith.constant 1.200000e+03 : f32
    %17 = vector.broadcast %cst_11 : f32 to vector<3x1024xf32>
    %18 = arith.divf %16, %17 : vector<3x1024xf32>
    %cst_12 = arith.constant 0.000000e+00 : f32
    %19 = vector.broadcast %cst_12 : f32 to vector<3x1024xf32>
    %20 = arith.maximumf %18, %19 : vector<3x1024xf32>
    %cst_13 = arith.constant 0.000000e+00 : f32
    %21 = vector.broadcast %cst_13 : f32 to vector<3x1024xf32>
    %22 = arith.subf %21, %20 : vector<3x1024xf32>
    %23 = math.exp %22 : vector<3x1024xf32>
    %cst_14 = arith.constant 1.000000e+00 : f32
    %24 = vector.broadcast %cst_14 : f32 to vector<3x1024xf32>
    %25 = arith.subf %24, %23 : vector<3x1024xf32>
    %cst_15 = arith.constant 1.200000e+03 : f32
    %26 = vector.broadcast %cst_15 : f32 to vector<3x1024xf32>
    %27 = arith.mulf %25, %26 : vector<3x1024xf32>
    %cst_16 = arith.constant 1.080000e+04 : f32
    %28 = vector.broadcast %cst_16 : f32 to vector<3x1024xf32>
    %29 = arith.addf %28, %27 : vector<3x1024xf32>
    %cst_17 = arith.constant 1.080000e+04 : f32
    %30 = vector.broadcast %cst_17 : f32 to vector<3x1024xf32>
    %31 = arith.cmpf olt, %14, %30 : vector<3x1024xf32>
    %32 = arith.select %31, %14, %29 : vector<3x1024xi1>, vector<3x1024xf32>
    %cst_18 = arith.constant 7.000000e-02 : f32
    %33 = vector.broadcast %cst_18 : f32 to vector<3x1024xf32>
    %34 = arith.mulf %33, %32 : vector<3x1024xf32>
    %c0_19 = arith.constant 0 : index
    %c0_20 = arith.constant 0 : index
    %c0_21 = arith.constant 0 : index
    %35 = vector.load %arg5[%c0_19, %c0_20, %c0_21] : memref<1x3x1024xf32, #tpu.memory_space<vmem>>, vector<1x3x1024xf32>
    %36 = vector.shape_cast %35 : vector<1x3x1024xf32> to vector<3x1024xf32>
    %cst_22 = arith.constant 2.000000e-02 : f32
    %37 = vector.broadcast %cst_22 : f32 to vector<3x1024xf32>
    %38 = arith.mulf %37, %36 : vector<3x1024xf32>
    %cst_23 = arith.constant 1.000000e+00 : f32
    %39 = vector.broadcast %cst_23 : f32 to vector<3x1024xf32>
    %40 = arith.addf %39, %38 : vector<3x1024xf32>
    %41 = arith.mulf %34, %40 : vector<3x1024xf32>
    %42 = math.roundeven %41 : vector<3x1024xf32>
    %cst_24 = arith.constant 1.023000e+03 : f32
    %43 = vector.broadcast %cst_24 : f32 to vector<3x1024xf32>
    %44 = arith.divf %42, %43 : vector<3x1024xf32>
    %cst_25 = arith.constant 0.000000e+00 : f32
    %cst_26 = arith.constant 1.000000e+00 : f32
    %45 = vector.broadcast %cst_25 : f32 to vector<3x1024xf32>
    %46 = arith.maximumf %45, %44 : vector<3x1024xf32>
    %47 = vector.broadcast %cst_26 : f32 to vector<3x1024xf32>
    %48 = arith.minimumf %47, %46 : vector<3x1024xf32>
    %c0_27 = arith.constant 0 : index
    %c0_28 = arith.constant 0 : index
    %c0_29 = arith.constant 0 : index
    %c0_30 = arith.constant 0 : index
    %49 = vector.load %arg6[%c0_27, %c0_28, %c0_29, %c0_30] : memref<1x1x3x1024xf32, #tpu.memory_space<vmem>>, vector<1x1x3x1024xf32>
    %50 = vector.shape_cast %49 : vector<1x1x3x1024xf32> to vector<3x1024xf32>
    %51 = vector.shape_cast %48 : vector<3x1024xf32> to vector<1x1x3x1024xf32>
    tpu.vector_store %arg6[%c0_27, %c0_28, %c0_29, %c0_30], %51 {strides = array<i32>} : memref<1x1x3x1024xf32, #tpu.memory_space<vmem>>, vector<1x1x3x1024xf32>,
    return
  }
  func.func @transform_0(%arg0: i32, %arg1: i32, %arg2: i32) -> (i32, i32, i32, i32) {
    %c0_i32 = arith.constant 0 : i32
    %c0_i32_0 = arith.constant 0 : i32
    return %arg0, %arg2, %arg1, %c0_i32 : i32, i32, i32, i32
  }
  func.func @transform_1(%arg0: i32, %arg1: i32, %arg2: i32) -> (i32, i32, i32, i32) {
    %c0_i32 = arith.constant 0 : i32
    %c0_i32_0 = arith.constant 0 : i32
    return %arg0, %arg2, %arg1, %c0_i32 : i32, i32, i32, i32
  }
  func.func @transform_2(%arg0: i32, %arg1: i32, %arg2: i32) -> (i32, i32, i32) {
    %c0_i32 = arith.constant 0 : i32
    %c0_i32_0 = arith.constant 0 : i32
    return %arg0, %arg1, %c0_i32 : i32, i32, i32
  }
  func.func @transform_3(%arg0: i32, %arg1: i32, %arg2: i32) -> (i32, i32, i32, i32) {
    %c0_i32 = arith.constant 0 : i32
    %c0_i32_0 = arith.constant 0 : i32
    return %arg0, %arg2, %arg1, %c0_i32 : i32, i32, i32, i32
  }
}

</mosaic_0001>

<llo_original>
// kernel: tpu_custom_call.1
$region0: #{tpu_custom_call.1}
  #allocation0 [shape = 'u32[]', space=smem, size = 0x4, offset = 0x4, fixed_abs, tag = 'smem constant byte address 0x4 - core index']
  #allocation1 [shape = 'u32[72,128]{1,0:T(1,128)}', space=vmem, size = 0x9000, scoped, tag = 'internal scratch']
  %s0 = inlined_call_operand.vmem [shape: f32[2,4,3,1024], index: 0, kind: input, shape index: {}]
  %s1 = inlined_call_operand.vmem [shape: f32[2,4,3,1024], index: 1, kind: input, shape index: {}]
  %s2 = inlined_call_operand.vmem [shape: f32[2,3,1024], index: 2, kind: input, shape index: {}]
  %s3 = inlined_call_operand.vmem [shape: f32[2,4,3,1024], index: 3, kind: output, shape index: {}]
  %s4 = sld [smem:[#allocation0]]
  $region45: #{tpu_custom_call.1} parent=0
    _
  %s6 = ssub.s32 1, %s4
  %s7 = scalar_select 0, %s6, %s4
  loop: start=0, step=1, limit=10
  $region2: #{tpu_custom_call.1} parent=0 // loop_pre_header
    _
  $region3: #{tpu_custom_call.1} parent=0 // loop_header
    %s9 = sphi 0, %s13
    %p10 = scmp.ge.s32.totalorder %s9, 10
    %s16 = sphi 0, %s35
    %s17 = sphi 0, %s31
    %s18 = sphi 0, %s27
    %s19 = sphi 0, %s16
    %s20 = sphi 0, %s17
    %s21 = sphi 0, %s18
    %s22 = sphi 0, %s19
    %s23 = sphi 0, %s20
    %s24 = sphi 0, %s21
    %s42 = sphi 0, %s44
    %s45 = sphi 0, %s42
    %s46 = sphi 0, %s45
    %s62 = sphi 0, %s46
    %s72 = sphi 0, %s74
    %s75 = sphi 0, %s72
    %s76 = sphi 0, %s75
    %s92 = sphi 0, %s76
    %s100 = sphi 0, %s102
    %s103 = sphi 0, %s100
    %s104 = sphi 0, %s103
    %s120 = sphi 0, %s104
    %s130 = sphi 0, %s132
    %s133 = sphi 0, %s130
    %s134 = sphi 0, %s133
    %s150 = sphi 0, %s134
  $region4: #{tpu_custom_call.1} parent=0 // loop_header_branch
    %12 = sbr.rel (%p10) target = $region8
  $region5: #{tpu_custom_call.1} parent=0 // loop_body
    %s14 = ssub.s32 %s9, 1
    %s15 = ssub.s32 %s9, 2
    %s25 = sadd.s32 1, %s18
    %p26 = scmp.ge.s32.totalorder %s25, 4
    %s27 = scalar_select %p26, 0, %s25
    %s28 = sadd.s32 1, %s17
    %s29 = scalar_select %p26, %s28, %s17
    %p30 = scmp.ge.s32.totalorder %s29, 1
    %s31 = scalar_select %p30, 0, %s29
    %s32 = sadd.s32 1, %s16
    %s33 = scalar_select %p30, %s32, %s16
    %p34 = scmp.ge.s32.totalorder %s33, 2
    %s35 = scalar_select %p34, 0, %s33
    %s36 = ssub.s32 %s16, %s35
    %s37 = ssub.s32 %s18, %s27
    %s38 = sor.u32 %s36, %s37
    %s39 = ssub.s32 %s17, %s31
    %s40 = sor.u32 %s38, %s39
    %p41 = scmp.eq.s32.totalorder %s40, 0
    %s43 = sadd.s32 %s42, 1
    %s44 = scalar_select %p41, %s42, %s43
    %p47 = pneg %p41
    %p48 = scmp.eq.s32.totalorder %s9, 7
    %p49 = por %p47, %p48
    %p50 = scmp.ne.s32.totalorder %s42, %s45
    %p51 = scmp.eq.s32.totalorder %s9, 0
    %p52 = por %p50, %p51
    %p53 = scmp.ne.s32.totalorder %s42, %s45
    %p54 = scmp.eq.s32.totalorder %s14, 7
    %p55 = por %p53, %p54
    %p56 = scmp.ne.s32.totalorder %s45, %s46
    %p57 = scmp.eq.s32.totalorder %s14, 0
    %p58 = por %p56, %p57
    %p59 = scmp.ne.s32.totalorder %s45, %s46
    %p60 = scmp.eq.s32.totalorder %s15, 7
    %p61 = por %p59, %p60
    %p63 = scmp.ne.s32.totalorder %s46, %s62
    %p64 = scmp.eq.s32.totalorder %s15, 0
    %p65 = por %p63, %p64
    %s66 = ssub.s32 %s16, %s35
    %s67 = ssub.s32 %s18, %s27
    %s68 = sor.u32 %s66, %s67
    %s69 = ssub.s32 %s17, %s31
    %s70 = sor.u32 %s68, %s69
    %p71 = scmp.eq.s32.totalorder %s70, 0
    %s73 = sadd.s32 %s72, 1
    %s74 = scalar_select %p71, %s72, %s73
    %p77 = pneg %p71
    %p78 = scmp.eq.s32.totalorder %s9, 7
    %p79 = por %p77, %p78
    %p80 = scmp.ne.s32.totalorder %s72, %s75
    %p81 = scmp.eq.s32.totalorder %s9, 0
    %p82 = por %p80, %p81
    %p83 = scmp.ne.s32.totalorder %s72, %s75
    %p84 = scmp.eq.s32.totalorder %s14, 7
    %p85 = por %p83, %p84
    %p86 = scmp.ne.s32.totalorder %s75, %s76
    %p87 = scmp.eq.s32.totalorder %s14, 0
    %p88 = por %p86, %p87
    %p89 = scmp.ne.s32.totalorder %s75, %s76
    %p90 = scmp.eq.s32.totalorder %s15, 7
    %p91 = por %p89, %p90
    %p93 = scmp.ne.s32.totalorder %s76, %s92
    %p94 = scmp.eq.s32.totalorder %s15, 0
    %p95 = por %p93, %p94
    %s96 = ssub.s32 %s16, %s35
    %s97 = ssub.s32 %s17, %s31
    %s98 = sor.u32 %s96, %s97
    %p99 = scmp.eq.s32.totalorder %s98, 0
    %s101 = sadd.s32 %s100, 1
    %s102 = scalar_select %p99, %s100, %s101
    %p105 = pneg %p99
    %p106 = scmp.eq.s32.totalorder %s9, 7
    %p107 = por %p105, %p106
    %p108 = scmp.ne.s32.totalorder %s100, %s103
    %p109 = scmp.eq.s32.totalorder %s9, 0
    %p110 = por %p108, %p109
    %p111 = scmp.ne.s32.totalorder %s100, %s103
    %p112 = scmp.eq.s32.totalorder %s14, 7
    %p113 = por %p111, %p112
    %p114 = scmp.ne.s32.totalorder %s103, %s104
    %p115 = scmp.eq.s32.totalorder %s14, 0
    %p116 = por %p114, %p115
    %p117 = scmp.ne.s32.totalorder %s103, %s104
    %p118 = scmp.eq.s32.totalorder %s15, 7
    %p119 = por %p117, %p118
    %p121 = scmp.ne.s32.totalorder %s104, %s120
    %p122 = scmp.eq.s32.totalorder %s15, 0
    %p123 = por %p121, %p122
    %s124 = ssub.s32 %s16, %s35
    %s125 = ssub.s32 %s18, %s27
    %s126 = sor.u32 %s124, %s125
    %s127 = ssub.s32 %s17, %s31
    %s128 = sor.u32 %s126, %s127
    %p129 = scmp.eq.s32.totalorder %s128, 0
    %s131 = sadd.s32 %s130, 1
    %s132 = scalar_select %p129, %s130, %s131
    %p135 = pneg %p129
    %p136 = scmp.eq.s32.totalorder %s9, 7
    %p137 = por %p135, %p136
    %p138 = scmp.ne.s32.totalorder %s130, %s133
    %p139 = scmp.eq.s32.totalorder %s9, 0
    %p140 = por %p138, %p139
    %p141 = scmp.ne.s32.totalorder %s130, %s133
    %p142 = scmp.eq.s32.totalorder %s14, 7
    %p143 = por %p141, %p142
    %p144 = scmp.ne.s32.totalorder %s133, %s134
    %p145 = scmp.eq.s32.totalorder %s14, 0
    %p146 = por %p144, %p145
    %p147 = scmp.ne.s32.totalorder %s133, %s134
    %p148 = scmp.eq.s32.totalorder %s15, 7
    %p149 = por %p147, %p148
    %p151 = scmp.ne.s32.totalorder %s134, %s150
    %p152 = scmp.eq.s32.totalorder %s15, 0
    %p153 = por %p151, %p152
    %p154 = scmp.le.s32.totalorder 1, %s9
    %p155 = scmp.lt.s32.totalorder %s9, 9
    %p156 = pnand %p154, %p155
    %p157 = pneg %p156
    // Predicated region
    $region9: #{tpu_custom_call.1} parent=5 // pred_check
      _
    $region10: #{tpu_custom_call.1} parent=5 // pred_check_branch
      %159 = sbr.rel (%p156) target = $region12
    $region11: #{tpu_custom_call.1} parent=5 // pred_region
      %s160 = ssub.s32 %s9, 1
    $region12: #{tpu_custom_call.1} parent=5 // pred_fallthru
      _
    %p161 = scmp.lt.s32.totalorder %s9, 8
    // Predicated region
    $region13: #{tpu_custom_call.1} parent=5 // pred_check
      %p162 = pneg %p161
    $region14: #{tpu_custom_call.1} parent=5 // pred_check_branch
      %164 = sbr.rel (%p162) target = $region16
    $region15: #{tpu_custom_call.1} parent=5 // pred_region
      // Predicated region
      $region17: #{tpu_custom_call.1} parent=15 // pred_check
        %p165 = pneg %p52
      $region18: #{tpu_custom_call.1} parent=15 // pred_check_branch
        %167 = sbr.rel (%p165) target = $region20
      $region19: #{tpu_custom_call.1} parent=15 // pred_region
        %p168 = scmp.lt.s32.totalorder %s16, 1
        %s169 = scalar_select %p168, %s16, 1
        %p170 = scmp.lt.s32.totalorder %s18, 3
        %s171 = scalar_select %p170, %s18, 3
        %p172 = scmp.lt.s32.totalorder %s17, 0
        %s173 = scalar_select %p172, %s17, 0
        %s174 = smul.addr %s173, 8
        %s175 = smul.addr %s171, 8
        %s176 = sadd.s32 %s174, %s175
        %s177 = smul.addr %s169, 32
        %s178 = sadd.s32 %s176, %s177
        %s179 = smul.addr %s178, 4
        %s180 = scalar_lea.vmem %s0, %s179
      $region20: #{tpu_custom_call.1} parent=15 // pred_fallthru
        _
      // Predicated region
      $region21: #{tpu_custom_call.1} parent=15 // pred_check
        %p181 = pneg %p82
      $region22: #{tpu_custom_call.1} parent=15 // pred_check_branch
        %183 = sbr.rel (%p181) target = $region24
      $region23: #{tpu_custom_call.1} parent=15 // pred_region
        %p184 = scmp.lt.s32.totalorder %s16, 1
        %s185 = scalar_select %p184, %s16, 1
        %p186 = scmp.lt.s32.totalorder %s18, 3
        %s187 = scalar_select %p186, %s18, 3
        %p188 = scmp.lt.s32.totalorder %s17, 0
        %s189 = scalar_select %p188, %s17, 0
        %s190 = smul.addr %s189, 8
        %s191 = smul.addr %s187, 8
        %s192 = sadd.s32 %s190, %s191
        %s193 = smul.addr %s185, 32
        %s194 = sadd.s32 %s192, %s193
        %s195 = smul.addr %s194, 4
        %s196 = scalar_lea.vmem %s1, %s195
      $region24: #{tpu_custom_call.1} parent=15 // pred_fallthru
        _
      // Predicated region
      $region25: #{tpu_custom_call.1} parent=15 // pred_check
        %p197 = pneg %p110
      $region26: #{tpu_custom_call.1} parent=15 // pred_check_branch
        %199 = sbr.rel (%p197) target = $region28
      $region27: #{tpu_custom_call.1} parent=15 // pred_region
        %p200 = scmp.lt.s32.totalorder %s16, 1
        %s201 = scalar_select %p200, %s16, 1
        %p202 = scmp.lt.s32.totalorder %s17, 0
        %s203 = scalar_select %p202, %s17, 0
        %s204 = smul.addr %s203, 8
        %s205 = smul.addr %s201, 8
        %s206 = sadd.s32 %s204, %s205
        %s207 = smul.addr %s206, 4
        %s208 = scalar_lea.vmem %s2, %s207
      $region28: #{tpu_custom_call.1} parent=15 // pred_fallthru
        _
    $region16: #{tpu_custom_call.1} parent=5 // pred_fallthru
      _
    %p209 = scmp.le.s32.totalorder 1, %s9
    %p210 = scmp.lt.s32.totalorder %s9, 9
    %p211 = pnand %p209, %p210
    %p212 = pneg %p211
    // Predicated region
    $region29: #{tpu_custom_call.1} parent=5 // pred_check
      _
    $region30: #{tpu_custom_call.1} parent=5 // pred_check_branch
      %214 = sbr.rel (%p211) target = $region32
    $region31: #{tpu_custom_call.1} parent=5 // pred_region
      %s215 = ssub.s32 %s9, 1
      %p216 = scmp.lt.s32.totalorder %s19, 1
      %s217 = scalar_select %p216, %s19, 1
      %p218 = scmp.lt.s32.totalorder %s21, 3
      %s219 = scalar_select %p218, %s21, 3
      %p220 = scmp.lt.s32.totalorder %s20, 0
      %s221 = scalar_select %p220, %s20, 0
      %s222 = smul.addr %s221, 8
      %s223 = smul.addr %s219, 8
      %s224 = sadd.s32 %s222, %s223
      %s225 = smul.addr %s217, 32
      %s226 = sadd.s32 %s224, %s225
      %s227 = smul.addr %s226, 4
      %s228 = scalar_lea.vmem %s0, %s227
      %p229 = pneg %p58
      %p230 = pneg %p55
      %p231 = scmp.lt.s32.totalorder %s19, 1
      %s232 = scalar_select %p231, %s19, 1
      %p233 = scmp.lt.s32.totalorder %s21, 3
      %s234 = scalar_select %p233, %s21, 3
      %p235 = scmp.lt.s32.totalorder %s20, 0
      %s236 = scalar_select %p235, %s20, 0
      %s237 = smul.addr %s236, 8
      %s238 = smul.addr %s234, 8
      %s239 = sadd.s32 %s237, %s238
      %s240 = smul.addr %s232, 32
      %s241 = sadd.s32 %s239, %s240
      %s242 = smul.addr %s241, 4
      %s243 = scalar_lea.vmem %s1, %s242
      %p244 = pneg %p88
      %p245 = pneg %p85
      %p246 = scmp.lt.s32.totalorder %s19, 1
      %s247 = scalar_select %p246, %s19, 1
      %p248 = scmp.lt.s32.totalorder %s20, 0
      %s249 = scalar_select %p248, %s20, 0
      %s250 = smul.addr %s249, 8
      %s251 = smul.addr %s247, 8
      %s252 = sadd.s32 %s250, %s251
      %s253 = smul.addr %s252, 4
      %s254 = scalar_lea.vmem %s2, %s253
      %p255 = pneg %p116
      %p256 = pneg %p113
      %p257 = pneg %p146
      %p258 = pneg %p143
      %p259 = scmp.lt.s32.totalorder %s19, 1
      %s260 = scalar_select %p259, %s19, 1
      %p261 = scmp.lt.s32.totalorder %s21, 3
      %s262 = scalar_select %p261, %s21, 3
      %p263 = scmp.lt.s32.totalorder %s20, 0
      %s264 = scalar_select %p263, %s20, 0
      %s265 = smul.addr %s264, 8
      %s266 = smul.addr %s262, 8
      %s267 = sadd.s32 %s265, %s266
      %s268 = smul.addr %s260, 32
      %s269 = sadd.s32 %s267, %s268
      %s270 = smul.addr %s269, 4
      %s271 = scalar_lea.vmem %s3, %s270
      %p272 = scmp.lt.s32.totalorder %s19, 1
      %s273 = scalar_select %p272, %s19, 1
      %p274 = scmp.lt.s32.totalorder %s21, 3
      %s275 = scalar_select %p274, %s21, 3
      %p276 = scmp.lt.s32.totalorder %s20, 0
      %s277 = scalar_select %p276, %s20, 0
      %s278 = smul.addr %s277, 8
      %s279 = smul.addr %s275, 8
      %s280 = sadd.s32 %s278, %s279
      %s281 = smul.addr %s273, 32
      %s282 = sadd.s32 %s280, %s281
      %s283 = smul.addr %s282, 4
      %s284 = scalar_lea.vmem %s0, %s283
      %p285 = scmp.lt.s32.totalorder %s19, 1
      %s286 = scalar_select %p285, %s19, 1
      %p287 = scmp.lt.s32.totalorder %s21, 3
      %s288 = scalar_select %p287, %s21, 3
      %p289 = scmp.lt.s32.totalorder %s20, 0
      %s290 = scalar_select %p289, %s20, 0
      %s291 = smul.addr %s290, 8
      %s292 = smul.addr %s288, 8
      %s293 = sadd.s32 %s291, %s292
      %s294 = smul.addr %s286, 32
      %s295 = sadd.s32 %s293, %s294
      %s296 = smul.addr %s295, 4
      %s297 = scalar_lea.vmem %s1, %s296
      %p298 = scmp.lt.s32.totalorder %s19, 1
      %s299 = scalar_select %p298, %s19, 1
      %p300 = scmp.lt.s32.totalorder %s20, 0
      %s301 = scalar_select %p300, %s20, 0
      %s302 = smul.addr %s301, 8
      %s303 = smul.addr %s299, 8
      %s304 = sadd.s32 %s302, %s303
      %s305 = smul.addr %s304, 4
      %s306 = scalar_lea.vmem %s2, %s305
      %p307 = scmp.lt.s32.totalorder %s19, 1
      %s308 = scalar_select %p307, %s19, 1
      %p309 = scmp.lt.s32.totalorder %s21, 3
      %s310 = scalar_select %p309, %s21, 3
      %p311 = scmp.lt.s32.totalorder %s20, 0
      %s312 = scalar_select %p311, %s20, 0
      %s313 = smul.addr %s312, 8
      %s314 = smul.addr %s310, 8
      %s315 = sadd.s32 %s313, %s314
      %s316 = smul.addr %s308, 32
      %s317 = sadd.s32 %s315, %s316
      %s318 = smul.addr %s317, 4
      %s319 = scalar_lea.vmem %s3, %s318
      %v320 = vld [vmem:[%s284] sm:$0x77]
      %v321 = vld [vmem:[%s284 + $0x8] sm:$0x77]
      %v322 = vld [vmem:[%s284 + $0x10] sm:$0x77]
      %v323 = vld [vmem:[%s284 + $0x18] sm:$0x77]
      %v324 = vmul.f32 %v320, 1.3088703e+08
      %v325 = vmul.f32 %v321, 1.3088703e+08
      %v326 = vmul.f32 %v322, 1.3088703e+08
      %v327 = vmul.f32 %v323, 1.3088703e+08
      %v328 = vadd.f32 %v324, 2.5
      %v329 = vadd.f32 %v325, 2.5
      %v330 = vadd.f32 %v326, 2.5
      %v331 = vadd.f32 %v327, 2.5
      %v332 = vmax.f32 %v328, 0.0
      %v333 = vmax.f32 %v329, 0.0
      %v334 = vmax.f32 %v330, 0.0
      %v335 = vmax.f32 %v331, 0.0
      %v336 = vadd.f32 %v332, 324.0
      %v337 = vadd.f32 %v333, 324.0
      %v338 = vadd.f32 %v334, 324.0
      %v339 = vadd.f32 %v335, 324.0
      %v340 = vrsqrt.pop %v336
      %v341 = vmul.f32 %v340, %v336
      %v342 = vmul.f32 %v341, %v340
      %v343 = vmul.f32 0.5, %v342
      %v344 = vsub.f32 1.5, %v343
      %v345 = vmul.f32 %v340, %v344
      %v346 = vmul.f32 %v336, %v345
      %vm347 = vcmp.eq.f32.partialorder %v336, inf
      %v348 = vsel %vm347, %v336, %v346
      %vm349 = vcmp.eq.f32.partialorder %v336, 0.0
      %v350 = vand.u32 %v336, 2147483648
      %v351 = vsel %vm349, %v350, %v348
      %v352 = vrsqrt.pop %v337
      %v353 = vmul.f32 %v352, %v337
      %v354 = vmul.f32 %v353, %v352
      %v355 = vmul.f32 0.5, %v354
      %v356 = vsub.f32 1.5, %v355
      %v357 = vmul.f32 %v352, %v356
      %v358 = vmul.f32 %v337, %v357
      %vm359 = vcmp.eq.f32.partialorder %v337, inf
      %v360 = vsel %vm359, %v337, %v358
      %vm361 = vcmp.eq.f32.partialorder %v337, 0.0
      %v362 = vand.u32 %v337, 2147483648
      %v363 = vsel %vm361, %v362, %v360
      %v364 = vrsqrt.pop %v338
      %v365 = vmul.f32 %v364, %v338
      %v366 = vmul.f32 %v365, %v364
      %v367 = vmul.f32 0.5, %v366
      %v368 = vsub.f32 1.5, %v367
      %v369 = vmul.f32 %v364, %v368
      %v370 = vmul.f32 %v338, %v369
      %vm371 = vcmp.eq.f32.partialorder %v338, inf
      %v372 = vsel %vm371, %v338, %v370
      %vm373 = vcmp.eq.f32.partialorder %v338, 0.0
      %v374 = vand.u32 %v338, 2147483648
      %v375 = vsel %vm373, %v374, %v372
      %v376 = vrsqrt.pop %v339
      %v377 = vmul.f32 %v376, %v339
      %v378 = vmul.f32 %v377, %v376
      %v379 = vmul.f32 0.5, %v378
      %v380 = vsub.f32 1.5, %v379
      %v381 = vmul.f32 %v376, %v380
      %v382 = vmul.f32 %v339, %v381
      %vm383 = vcmp.eq.f32.partialorder %v339, inf
      %v384 = vsel %vm383, %v339, %v382
      %vm385 = vcmp.eq.f32.partialorder %v339, 0.0
      %v386 = vand.u32 %v339, 2147483648
      %v387 = vsel %vm385, %v386, %v384
      %v388 = vld [vmem:[%s297] sm:$0x77]
      %v389 = vld [vmem:[%s297 + $0x8] sm:$0x77]
      %v390 = vld [vmem:[%s297 + $0x10] sm:$0x77]
      %v391 = vld [vmem:[%s297 + $0x18] sm:$0x77]
      %v392 = vmul.f32 %v351, %v388
      %v393 = vmul.f32 %v363, %v389
      %v394 = vmul.f32 %v375, %v390
      %v395 = vmul.f32 %v387, %v391
      %v396 = vadd.f32 %v324, %v392
      %v397 = vadd.f32 %v325, %v393
      %v398 = vadd.f32 %v326, %v394
      %v399 = vadd.f32 %v327, %v395
      %v400 = vsub.f32 %v396, 10800.0
      %v401 = vsub.f32 %v397, 10800.0
      %v402 = vsub.f32 %v398, 10800.0
      %v403 = vsub.f32 %v399, 10800.0
      %v404 = vrcp.pop 1200.0
      %v405 = vmul.f32 1200.0, %v404
      %v406 = vsub.f32 1.0, %v405
      %v407 = vmul.f32 %v404, %v406
      %v408 = vadd.f32 %v404, %v407
      %vm409 = vweird.f32 %v404
      %v410 = vsel %vm409, %v404, %v408
      %v411 = vmul.f32 %v400, %v410
      %v412 = vmul.f32 %v401, %v410
      %v413 = vmul.f32 %v402, %v410
      %v414 = vmul.f32 %v403, %v410
      %v415 = vmax.f32 %v411, 0.0
      %v416 = vmax.f32 %v412, 0.0
      %v417 = vmax.f32 %v413, 0.0
      %v418 = vmax.f32 %v414, 0.0
      %v419 = vsub.f32 0.0, %v415
      %v420 = vsub.f32 0.0, %v416
      %v421 = vsub.f32 0.0, %v417
      %v422 = vsub.f32 0.0, %v418
      %v423 = vmul.f32 %v419, 1.442695
      %v424 = vpow.pop %v423
      %v425 = vmul.f32 %v420, 1.442695
      %v426 = vpow.pop %v425
      %v427 = vmul.f32 %v421, 1.442695
      %v428 = vpow.pop %v427
      %v429 = vmul.f32 %v422, 1.442695
      %v430 = vpow.pop %v429
      %v431 = vsub.f32 1.0, %v424
      %v432 = vsub.f32 1.0, %v426
      %v433 = vsub.f32 1.0, %v428
      %v434 = vsub.f32 1.0, %v430
      %v435 = vmul.f32 %v431, 1200.0
      %v436 = vmul.f32 %v432, 1200.0
      %v437 = vmul.f32 %v433, 1200.0
      %v438 = vmul.f32 %v434, 1200.0
      %v439 = vadd.f32 %v435, 10800.0
      %v440 = vadd.f32 %v436, 10800.0
      %v441 = vadd.f32 %v437, 10800.0
      %v442 = vadd.f32 %v438, 10800.0
      %vm443 = vcmp.lt.f32.partialorder %v396, 10800.0
      %vm444 = vcmp.lt.f32.partialorder %v397, 10800.0
      %vm445 = vcmp.lt.f32.partialorder %v398, 10800.0
      %vm446 = vcmp.lt.f32.partialorder %v399, 10800.0
      %v447 = vsel %vm443, %v396, %v439
      %v448 = vsel %vm444, %v397, %v440
      %v449 = vsel %vm445, %v398, %v441
      %v450 = vsel %vm446, %v399, %v442
      %v451 = vmul.f32 %v447, 0.07
      %v452 = vmul.f32 %v448, 0.07
      %v453 = vmul.f32 %v449, 0.07
      %v454 = vmul.f32 %v450, 0.07
      %v455 = vld [vmem:[%s306] sm:$0x77]
      %v456 = vld [vmem:[%s306 + $0x8] sm:$0x77]
      %v457 = vld [vmem:[%s306 + $0x10] sm:$0x77]
      %v458 = vld [vmem:[%s306 + $0x18] sm:$0x77]
      %v459 = vmul.f32 %v455, 0.02
      %v460 = vmul.f32 %v456, 0.02
      %v461 = vmul.f32 %v457, 0.02
      %v462 = vmul.f32 %v458, 0.02
      %v463 = vadd.f32 %v459, 1.0
      %v464 = vadd.f32 %v460, 1.0
      %v465 = vadd.f32 %v461, 1.0
      %v466 = vadd.f32 %v462, 1.0
      %v467 = vmul.f32 %v451, %v463
      %v468 = vmul.f32 %v452, %v464
      %v469 = vmul.f32 %v453, %v465
      %v470 = vmul.f32 %v454, %v466
      %v471 = vround.ne.pseudo %v467
      %v472 = vround.ne.pseudo %v468
      %v473 = vround.ne.pseudo %v469
      %v474 = vround.ne.pseudo %v470
      %v475 = vrcp.pop 1023.0
      %v476 = vmul.f32 1023.0, %v475
      %v477 = vsub.f32 1.0, %v476
      %v478 = vmul.f32 %v475, %v477
      %v479 = vadd.f32 %v475, %v478
      %vm480 = vweird.f32 %v475
      %v481 = vsel %vm480, %v475, %v479
      %v482 = vmul.f32 %v471, %v481
      %v483 = vmul.f32 %v472, %v481
      %v484 = vmul.f32 %v473, %v481
      %v485 = vmul.f32 %v474, %v481
      %v486 = vmax.f32 %v482, 0.0
      %v487 = vmax.f32 %v483, 0.0
      %v488 = vmax.f32 %v484, 0.0
      %v489 = vmax.f32 %v485, 0.0
      %v490 = vmin.f32 %v486, 1.0
      %v491 = vmin.f32 %v487, 1.0
      %v492 = vmin.f32 %v488, 1.0
      %v493 = vmin.f32 %v489, 1.0
      %494 = vst [vmem:[%s319] sm:$0x77] %v490
      %495 = vst [vmem:[%s319 + $0x8] sm:$0x77] %v491
      %496 = vst [vmem:[%s319 + $0x10] sm:$0x77] %v492
      %497 = vst [vmem:[%s319 + $0x18] sm:$0x77] %v493
      %p498 = scmp.lt.s32.totalorder %s19, 1
      %s499 = scalar_select %p498, %s19, 1
      %p500 = scmp.lt.s32.totalorder %s21, 3
      %s501 = scalar_select %p500, %s21, 3
      %p502 = scmp.lt.s32.totalorder %s20, 0
      %s503 = scalar_select %p502, %s20, 0
      %s504 = smul.addr %s503, 8
      %s505 = smul.addr %s501, 8
      %s506 = sadd.s32 %s504, %s505
      %s507 = smul.addr %s499, 32
      %s508 = sadd.s32 %s506, %s507
      %s509 = smul.addr %s508, 4
      %s510 = scalar_lea.vmem %s3, %s509
      // Predicated region
      $region33: #{tpu_custom_call.1} parent=31 // pred_check
        %p511 = pneg %p143
      $region34: #{tpu_custom_call.1} parent=31 // pred_check_branch
        %513 = sbr.rel (%p511) target = $region36
      $region35: #{tpu_custom_call.1} parent=31 // pred_region
        _
      $region36: #{tpu_custom_call.1} parent=31 // pred_fallthru
        _
    $region32: #{tpu_custom_call.1} parent=5 // pred_fallthru
      _
    %p514 = scmp.le.s32.totalorder 2, %s9
    // Predicated region
    $region37: #{tpu_custom_call.1} parent=5 // pred_check
      %p515 = pneg %p514
    $region38: #{tpu_custom_call.1} parent=5 // pred_check_branch
      %517 = sbr.rel (%p515) target = $region40
    $region39: #{tpu_custom_call.1} parent=5 // pred_region
      %s518 = ssub.s32 %s9, 2
      // Predicated region
      $region41: #{tpu_custom_call.1} parent=39 // pred_check
        %p519 = pneg %p149
      $region42: #{tpu_custom_call.1} parent=39 // pred_check_branch
        %521 = sbr.rel (%p519) target = $region44
      $region43: #{tpu_custom_call.1} parent=39 // pred_region
        %p522 = scmp.lt.s32.totalorder %s22, 1
        %s523 = scalar_select %p522, %s22, 1
        %p524 = scmp.lt.s32.totalorder %s24, 3
        %s525 = scalar_select %p524, %s24, 3
        %p526 = scmp.lt.s32.totalorder %s23, 0
        %s527 = scalar_select %p526, %s23, 0
        %s528 = smul.addr %s527, 8
        %s529 = smul.addr %s525, 8
        %s530 = sadd.s32 %s528, %s529
        %s531 = smul.addr %s523, 32
        %s532 = sadd.s32 %s530, %s531
        %s533 = smul.addr %s532, 4
        %s534 = scalar_lea.vmem %s3, %s533
      $region44: #{tpu_custom_call.1} parent=39 // pred_fallthru
        _
    $region40: #{tpu_custom_call.1} parent=5 // pred_fallthru
      _
  $region6: #{tpu_custom_call.1} parent=0 // loop_footer
    %s13 = sadd.s32 1, %s9
  $region7: #{tpu_custom_call.1} parent=0 // loop_footer_branch
    %8 = sbr.rel target = $region3
  $region8: #{tpu_custom_call.1} parent=0 // loop_exit
    _

</llo_original>
